<compile_context>
chip_gen: v7x
topology: tpu7x:2x2x1
jax: 0.10.0
libtpu: 0.0.40
codegen_flags: <defaults>
</compile_context>

<pallas_src>
import functools

import jax
import jax.numpy as jnp
from jax.experimental import pallas as pl
from jax.experimental.pallas import tpu as pltpu


def _round_up(n, m):
    return ((n + m - 1) // m) * m


def _pick_batch_tile(batch):
    """Rows per grid step (always a multiple of 8 sublanes)."""
    if batch < 256:
        # Single step: splitting below ~128 rows/step only adds the ~0.35 us
        # per-step overhead and cannot feed both v7x TCs usefully.
        return batch
    # >= 256 rows: guarantee >= 2 grid steps so the "parallel" batch axis can
    # shard across v7x's two TensorCores, with tiles in the 128..1024 range
    # (512-1024-row streams measure ~85% of HBM roofline).
    half = _round_up(pl.cdiv(batch, 2), 8)
    return max(128, min(1024, half))


_ACTIVATIONS = {
    "tanh": jnp.tanh,
    "relu": lambda v: jnp.maximum(v, 0.0),
    "sigmoid": jax.nn.sigmoid,
}


def _make_fused_kernel(n_layers, activation="tanh"):
    act = _ACTIVATIONS[activation]

    def kernel(x_ref, *refs):
        # refs = (w1, b1, w2, b2, ..., o_ref); statically unrolled over layers.
        param_refs = refs[:-1]
        o_ref = refs[-1]
        compute_dtype = x_ref.dtype
        h = x_ref[...]
        for layer in range(n_layers):
            w_ref = param_refs[2 * layer]
            b_ref = param_refs[2 * layer + 1]
            # MXU matmul with f32 accumulation; bias add + activation on the
            # f32 accumulator (EUP).  Intermediate activation is narrowed
            # back to the compute dtype (bf16 path halves vreg/VMEM traffic).
            y32 = jnp.dot(h, w_ref[...], preferred_element_type=jnp.float32)
            y32 = act(y32 + b_ref[...])
            h = y32.astype(compute_dtype) if layer + 1 < n_layers else y32
        o_ref[...] = h.astype(o_ref.dtype)

    return kernel


def mlp_forward_fused(x, params, *, compute_dtype=None, activation="tanh"):
    """act(... act(x @ W1 + b1) ... @ Wn + bn) in one pallas_call."""
    B, d_in = x.shape
    dims = [d_in] + [w.shape[1] for (w, _) in params]
    d_out = dims[-1]
    n_layers = len(params)
    tb = _pick_batch_tile(B)

    out_dtype = x.dtype
    if compute_dtype is None:
        compute_dtype = x.dtype
    compute_dtype = jnp.dtype(compute_dtype)
    cdt_size = compute_dtype.itemsize

    # Input specs: batch-tiled x, then grid-invariant (weight, bias) pairs.
    # Weight/bias index maps are constant across the grid -> single-buffer
    # them (Buffered(1)) so they don't burn 2x VMEM.
    in_specs = [pl.BlockSpec((tb, d_in), lambda i: (i, 0))]
    flat_args = [x.astype(compute_dtype)]
    for (w, b), din, dout in zip(params, dims[:-1], dims[1:]):
        in_specs.append(
            pl.BlockSpec((din, dout), lambda i: (0, 0),
                         pipeline_mode=pl.Buffered(1)))
        in_specs.append(
            pl.BlockSpec((1, dout), lambda i: (0, 0),
                         pipeline_mode=pl.Buffered(1)))
        flat_args.append(w.astype(compute_dtype))
        flat_args.append(b.reshape(1, dout).astype(jnp.float32))  # add in f32

    # VMEM budget: resident weights (x1, single-buffered) + biases +
    # double-buffered activation tiles + f32 in-kernel temporaries.
    resident_bytes = (
        sum(din * dout for din, dout in zip(dims[:-1], dims[1:])) * cdt_size
        + sum(dims[1:]) * 4
        + 2 * tb * d_in * cdt_size
        + 2 * tb * d_out * jnp.dtype(out_dtype).itemsize
        + 2 * tb * max(dims) * 4
    )
    vmem_limit = None
    if resident_bytes > (16 << 20):
        vmem_limit = min(100 << 20, int(resident_bytes * 1.25) + (4 << 20))

    # Advisory cost estimate for the XLA scheduler.
    flops = sum(2 * B * din * dout for din, dout in zip(dims[:-1], dims[1:]))
    transcendentals = sum(B * dout for dout in dims[1:])
    bytes_accessed = (
        B * d_in * cdt_size
        + sum(din * dout for din, dout in zip(dims[:-1], dims[1:])) * cdt_size
        + sum(dims[1:]) * 4
        + B * d_out * jnp.dtype(out_dtype).itemsize
    )

    return pl.pallas_call(
        _make_fused_kernel(n_layers, activation),
        out_shape=jax.ShapeDtypeStruct((B, d_out), out_dtype),
        grid=(pl.cdiv(B, tb),),
        in_specs=in_specs,
        out_specs=pl.BlockSpec((tb, d_out), lambda i: (i, 0)),
        compiler_params=pltpu.CompilerParams(
            dimension_semantics=("parallel",),
            vmem_limit_bytes=vmem_limit,
        ),
        cost_estimate=pl.CostEstimate(
            flops=flops,
            transcendentals=transcendentals,
            bytes_accessed=bytes_accessed,
        ),
    )(*flat_args)


mlp_forward = jax.jit(
    functools.partial(mlp_forward_fused),
    static_argnames=("compute_dtype", "activation"),
)


def init_mlp_params(key, input_dim, hidden_dims=(128, 128), dtype=jnp.float32):
    """Mirrors initialize_weights for nn.Linear: W ~ N(0, 0.01), b = 0."""
    params = []
    last_dim = input_dim
    for nh in hidden_dims:
        key, sub = jax.random.split(key)
        # PyTorch stores (out, in); we keep the transposed (in, out) layout.
        w = (jax.random.normal(sub, (last_dim, nh), dtype=jnp.float32) * 0.01
             ).astype(dtype)
        b = jnp.zeros((nh,), dtype=dtype)
        params.append((w, b))
        last_dim = nh
    return params


def mlp_forward_ref(x, params, activation="tanh"):
    act = _ACTIVATIONS[activation]
    for w, b in params:
        x = act(x @ w + b)
    return x


if __name__ == "__main__":
    key = jax.random.PRNGKey(0)
    input_dim = 32
    hidden_dims = (128, 128)

    kx, kp, kx2 = jax.random.split(key, 3)
    params = init_mlp_params(kp, input_dim, hidden_dims)

    # --- f32 path (matches the PyTorch module numerics) -------------------
    batch = 8
    x = jax.random.normal(kx, (batch, input_dim), dtype=jnp.float32)
    out = mlp_forward(x, params)
    jax.block_until_ready(out)
    ref = mlp_forward_ref(x, params)
    assert out.shape == (batch, hidden_dims[-1])
    assert jnp.allclose(out, ref, atol=1e-5, rtol=1e-5)

    # --- multi-step grid (B >= 256, non-divisible -> padded last tile) ----
    batch2 = 300
    x2 = jax.random.normal(kx2, (batch2, input_dim), dtype=jnp.float32)
    out2 = mlp_forward(x2, params)
    jax.block_until_ready(out2)
    ref2 = mlp_forward_ref(x2, params)
    assert out2.shape == (batch2, hidden_dims[-1])
    assert jnp.allclose(out2, ref2, atol=1e-5, rtol=1e-5)

    # --- bf16 compute path (f32 accumulation), relaxed tolerance ----------
    out_bf16 = mlp_forward(x2, params, compute_dtype=jnp.bfloat16)
    jax.block_until_ready(out_bf16)
    assert out_bf16.shape == (batch2, hidden_dims[-1])
    assert jnp.allclose(out_bf16, ref2, atol=1e-2, rtol=5e-2)

    print("KERNEL_OK")
</pallas_src>

<mosaic_0001>
module attributes {stable_mosaic.version = 11 : i64} {
  func.func @kernel(%arg0: i32, %arg1: memref<8x32xf32, #tpu.memory_space<vmem>>, %arg2: memref<32x128xf32, #tpu.memory_space<vmem>>, %arg3: memref<1x128xf32, #tpu.memory_space<vmem>>, %arg4: memref<128x128xf32, #tpu.memory_space<vmem>>, %arg5: memref<1x128xf32, #tpu.memory_space<vmem>>, %arg6: memref<8x128xf32, #tpu.memory_space<vmem>>) attributes {dimension_semantics = [#tpu.dimension_semantics<parallel>], iteration_bounds = array<i64: 1>, scalar_prefetch = 0 : i64, scratch_operands = 0 : i64, tpu.core_type = #tpu.core_type<tc>, window_params = [{transform_indices = @transform_0, window_bounds = array<i64: 8, 32>}, {pipeline_mode = #tpu.pipeline_mode<synchronous>, transform_indices = @transform_1, window_bounds = array<i64: 32, 128>}, {pipeline_mode = #tpu.pipeline_mode<synchronous>, transform_indices = @transform_2, window_bounds = array<i64: 1, 128>}, {pipeline_mode = #tpu.pipeline_mode<synchronous>, transform_indices = @transform_3, window_bounds = array<i64: 128, 128>}, {pipeline_mode = #tpu.pipeline_mode<synchronous>, transform_indices = @transform_4, window_bounds = array<i64: 1, 128>}, {transform_indices = @transform_5, window_bounds = array<i64: 8, 128>}]} {
    %c0 = arith.constant 0 : index
    %c0_0 = arith.constant 0 : index
    %0 = vector.load %arg1[%c0, %c0_0] : memref<8x32xf32, #tpu.memory_space<vmem>>, vector<8x32xf32>
    %c0_1 = arith.constant 0 : index
    %c0_2 = arith.constant 0 : index
    %1 = vector.load %arg2[%c0_1, %c0_2] : memref<32x128xf32, #tpu.memory_space<vmem>>, vector<32x128xf32>
    %cst = arith.constant dense<0.000000e+00> : vector<8x128xf32>
    %2 = tpu.matmul %0, %1, %cst {dimension_numbers = #tpu.dot_dimension_numbers<[1], [0], [0], [1], [0, 0, 1, 1], [], []>} : vector<8x32xf32>, vector<32x128xf32>, vector<8x128xf32> -> vector<8x128xf32>
    %c0_3 = arith.constant 0 : index
    %c0_4 = arith.constant 0 : index
    %3 = vector.load %arg3[%c0_3, %c0_4] : memref<1x128xf32, #tpu.memory_space<vmem>>, vector<1x128xf32>
    %4 = vector.broadcast %3 : vector<1x128xf32> to vector<8x128xf32>
    %5 = arith.addf %2, %4 : vector<8x128xf32>
    %6 = math.tanh %5 : vector<8x128xf32>
    %c0_5 = arith.constant 0 : index
    %c0_6 = arith.constant 0 : index
    %7 = vector.load %arg4[%c0_5, %c0_6] : memref<128x128xf32, #tpu.memory_space<vmem>>, vector<128x128xf32>
    %cst_7 = arith.constant dense<0.000000e+00> : vector<8x128xf32>
    %8 = tpu.matmul %6, %7, %cst_7 {dimension_numbers = #tpu.dot_dimension_numbers<[1], [0], [0], [1], [0, 0, 1, 1], [], []>} : vector<8x128xf32>, vector<128x128xf32>, vector<8x128xf32> -> vector<8x128xf32>
    %c0_8 = arith.constant 0 : index
    %c0_9 = arith.constant 0 : index
    %9 = vector.load %arg5[%c0_8, %c0_9] : memref<1x128xf32, #tpu.memory_space<vmem>>, vector<1x128xf32>
    %10 = vector.broadcast %9 : vector<1x128xf32> to vector<8x128xf32>
    %11 = arith.addf %8, %10 : vector<8x128xf32>
    %12 = math.tanh %11 : vector<8x128xf32>
    %c0_10 = arith.constant 0 : index
    %c0_11 = arith.constant 0 : index
    %13 = vector.load %arg6[%c0_10, %c0_11] : memref<8x128xf32, #tpu.memory_space<vmem>>, vector<8x128xf32>
    tpu.vector_store %arg6[%c0_10, %c0_11], %12 {strides = array<i32>} : memref<8x128xf32, #tpu.memory_space<vmem>>, vector<8x128xf32>,
    return
  }
  func.func @transform_0(%arg0: i32) -> (i32, i32) {
    %c0_i32 = arith.constant 0 : i32
    %c0_i32_0 = arith.constant 0 : i32
    return %arg0, %c0_i32 : i32, i32
  }
  func.func @transform_1(%arg0: i32) -> (i32, i32) {
    %c0_i32 = arith.constant 0 : i32
    %c0_i32_0 = arith.constant 0 : i32
    %c0_i32_1 = arith.constant 0 : i32
    return %c0_i32, %c0_i32_0 : i32, i32
  }
  func.func @transform_2(%arg0: i32) -> (i32, i32) {
    %c0_i32 = arith.constant 0 : i32
    %c0_i32_0 = arith.constant 0 : i32
    %c0_i32_1 = arith.constant 0 : i32
    return %c0_i32, %c0_i32_0 : i32, i32
  }
  func.func @transform_3(%arg0: i32) -> (i32, i32) {
    %c0_i32 = arith.constant 0 : i32
    %c0_i32_0 = arith.constant 0 : i32
    %c0_i32_1 = arith.constant 0 : i32
    return %c0_i32, %c0_i32_0 : i32, i32
  }
  func.func @transform_4(%arg0: i32) -> (i32, i32) {
    %c0_i32 = arith.constant 0 : i32
    %c0_i32_0 = arith.constant 0 : i32
    %c0_i32_1 = arith.constant 0 : i32
    return %c0_i32, %c0_i32_0 : i32, i32
  }
  func.func @transform_5(%arg0: i32) -> (i32, i32) {
    %c0_i32 = arith.constant 0 : i32
    %c0_i32_0 = arith.constant 0 : i32
    return %arg0, %c0_i32 : i32, i32
  }
}

</mosaic_0001>

<llo_original>
// kernel: mlp_forward_fused.1
$region0: #{mlp_forward_fused.1}
  #allocation0 [shape = 'u32[]', space=smem, size = 0x4, offset = 0x4, fixed_abs, tag = 'smem constant byte address 0x4 - core index']
  #allocation1 [shape = 'u32[144,128]{1,0:T(1,128)}', space=vmem, size = 0x12000, scoped, tag = 'internal scratch']
  %s0 = inlined_call_operand.hbm [shape: f32[8,32], index: 0, kind: input, shape index: {}]
  %s1 = inlined_call_operand.hbm [shape: f32[32,128], index: 1, kind: input, shape index: {}]
  %s2 = inlined_call_operand.vmem [shape: f32[1,128], index: 2, kind: input, shape index: {}]
  %s3 = inlined_call_operand.hbm [shape: f32[128,128], index: 3, kind: input, shape index: {}]
  %s4 = inlined_call_operand.vmem [shape: f32[1,128], index: 4, kind: input, shape index: {}]
  %s5 = inlined_call_operand.hbm [shape: f32[8,128], index: 5, kind: output, shape index: {}]
  %s6 = sld [smem:[#allocation0]]
  $region42: #{mlp_forward_fused.1} parent=0
    _
  %s8 = ssub.s32 1, %s6
  %s9 = scalar_select 0, %s8, %s6
  $region1: #{mlp_forward_fused.1} parent=0
    #allocation2 [shape = 'u8[4096]{0}', space=vmem, size = 0x1000, scoped, tag = 'input window, operand 0, single buffered']
    #allocation3 [shape = 's32[1]{0}', space=sflag, size = 0x4, scoped, tag = 'scoped memory for mlp_forward_fused.1']
    #allocation4 [shape = 's32[1]{0}', space=sflag, size = 0x4, scoped, tag = 'scoped memory for mlp_forward_fused.1']
    #allocation5 [shape = 'u8[16384]{0}', space=vmem, size = 0x4000, scoped, tag = 'input window, operand 1, single buffered']
    #allocation6 [shape = 's32[1]{0}', space=sflag, size = 0x4, scoped, tag = 'scoped memory for mlp_forward_fused.1']
    #allocation7 [shape = 'u8[65536]{0}', space=vmem, size = 0x10000, scoped, tag = 'input window, operand 3, single buffered']
    #allocation8 [shape = 'u8[4096]{0}', space=vmem, size = 0x1000, scoped, tag = 'output window, operand 0, single buffered']
    %10 = vsyncpa [#allocation3], 0
    %11 = vsyncpa [#allocation6], 0
    %12 = vsyncpa [#allocation4], 0
    // Predicated region
    $region2: #{mlp_forward_fused.1} parent=1 // pred_check
      _
    $region3: #{mlp_forward_fused.1} parent=1 // pred_check_branch
      %14 = sbr.rel (0) target = $region5
    $region4: #{mlp_forward_fused.1} parent=1 // pred_region
      %s16 = ssub.s32 128, 128
      %17 = vsyncadd [#allocation3], %s16
      %s19 = sshll.u32 [#allocation2], 4
      %s20 = int_to_ptr.vmem [resolvable:$true] %s19
      %22 = dma.hbm_to_vmem [thread:$0]  %s0, 128, %s20, [#allocation3]
    $region5: #{mlp_forward_fused.1} parent=1 // pred_fallthru
      _
    // Predicated region
    $region6: #{mlp_forward_fused.1} parent=1 // pred_check
      _
    $region7: #{mlp_forward_fused.1} parent=1 // pred_check_branch
      %24 = sbr.rel (0) target = $region9
    $region8: #{mlp_forward_fused.1} parent=1 // pred_region
      %s26 = ssub.s32 512, 512
      %27 = vsyncadd [#allocation6], %s26
      %s28 = sshll.u32 [#allocation5], 4
      %s29 = int_to_ptr.vmem [resolvable:$true] %s28
      %34 = dma.hbm_to_vmem [thread:$0]  %s1, 512, %s29, [#allocation6], 128, 128, 8
    $region9: #{mlp_forward_fused.1} parent=1 // pred_fallthru
      _
    // Predicated region
    $region10: #{mlp_forward_fused.1} parent=1 // pred_check
      _
    $region11: #{mlp_forward_fused.1} parent=1 // pred_check_branch
      %36 = sbr.rel (0) target = $region13
    $region12: #{mlp_forward_fused.1} parent=1 // pred_region
      _
    $region13: #{mlp_forward_fused.1} parent=1 // pred_fallthru
      _
    // Predicated region
    $region14: #{mlp_forward_fused.1} parent=1 // pred_check
      _
    $region15: #{mlp_forward_fused.1} parent=1 // pred_check_branch
      %38 = sbr.rel (0) target = $region17
    $region16: #{mlp_forward_fused.1} parent=1 // pred_region
      %s40 = ssub.s32 2048, 2048
      %41 = vsyncadd [#allocation6], %s40
      %s42 = sshll.u32 [#allocation7], 4
      %s43 = int_to_ptr.vmem [resolvable:$true] %s42
      %48 = dma.hbm_to_vmem [thread:$0]  %s3, 2048, %s43, [#allocation6], 128, 128, 8
    $region17: #{mlp_forward_fused.1} parent=1 // pred_fallthru
      _
    // Predicated region
    $region18: #{mlp_forward_fused.1} parent=1 // pred_check
      _
    $region19: #{mlp_forward_fused.1} parent=1 // pred_check_branch
      %50 = sbr.rel (0) target = $region21
    $region20: #{mlp_forward_fused.1} parent=1 // pred_region
      _
    $region21: #{mlp_forward_fused.1} parent=1 // pred_fallthru
      _
    // Predicated region
    $region22: #{mlp_forward_fused.1} parent=1 // pred_check
      _
    $region23: #{mlp_forward_fused.1} parent=1 // pred_check_branch
      %52 = sbr.rel (0) target = $region25
    $region24: #{mlp_forward_fused.1} parent=1 // pred_region
      %53 = dma.done [#allocation3], 128
    $region25: #{mlp_forward_fused.1} parent=1 // pred_fallthru
      _
    // Predicated region
    $region26: #{mlp_forward_fused.1} parent=1 // pred_check
      _
    $region27: #{mlp_forward_fused.1} parent=1 // pred_check_branch
      %55 = sbr.rel (0) target = $region29
    $region28: #{mlp_forward_fused.1} parent=1 // pred_region
      %56 = dma.done [#allocation6], 512
    $region29: #{mlp_forward_fused.1} parent=1 // pred_fallthru
      _
    // Predicated region
    $region30: #{mlp_forward_fused.1} parent=1 // pred_check
      _
    $region31: #{mlp_forward_fused.1} parent=1 // pred_check_branch
      %58 = sbr.rel (0) target = $region33
    $region32: #{mlp_forward_fused.1} parent=1 // pred_region
      %59 = dma.done [#allocation6], 2048
    $region33: #{mlp_forward_fused.1} parent=1 // pred_fallthru
      _
    %v60 = vld [vmem:[#allocation2] sm:$0xff]
    %v61 = vld [vmem:[#allocation5] sm:$0xff]
    %v62 = vld [vmem:[#allocation5 + $0x8] sm:$0xff]
    %v63 = vld [vmem:[#allocation5 + $0x10] sm:$0xff]
    %v64 = vld [vmem:[#allocation5 + $0x18] sm:$0xff]
    %v65 = vld [vmem:[%s2] sm:$0x1]
    %v67 = vlaneseq
    %v68 = vshrl.u32 %v67, 7
    %v69 = vsub.s32 0, %v68
    %v70 = vrot.slane %v65, %v69
    %vm72 = vcmask 261120
    %v74 = vsel %vm72, %v60, 0
    %76 = vmatprep.subr.mxu0 0.0
    %77 = vmatpush1.msra.mxu0 %v61
    %78 = vmatprep.subr.mxu0 0.0
    %79 = vmatpush1.msra.mxu0 %v62
    %80 = vmatprep.subr.mxu0 0.0
    %81 = vmatpush1.msra.mxu0 %v63
    %82 = vmatprep.subr.mxu0 0.0
    %83 = vmatpush1.msra.mxu0 %v64
    %84 = vmatprep.subr.mxu0 0.0
    %85 = vmatpush1.msra.mxu0 0.0
    %86 = vmatprep.subr.mxu0 0.0
    %87 = vmatpush1.msra.mxu0 0.0
    %88 = vmatprep.subr.mxu0 0.0
    %89 = vmatpush1.msra.mxu0 0.0
    %90 = vmatprep.subr.mxu0 0.0
    %91 = vmatpush1.msra.mxu0 0.0
    %92 = vmatprep.subr.mxu0 0.0
    %93 = vmatpush1.msra.mxu0 0.0
    %94 = vmatprep.subr.mxu0 0.0
    %95 = vmatpush1.msra.mxu0 0.0
    %96 = vmatprep.subr.mxu0 0.0
    %97 = vmatpush1.msra.mxu0 0.0
    %98 = vmatprep.subr.mxu0 0.0
    %99 = vmatpush1.msra.mxu0 0.0
    %100 = vmatprep.subr.mxu0 0.0
    %101 = vmatpush1.msra.mxu0 0.0
    %102 = vmatprep.subr.mxu0 0.0
    %103 = vmatpush1.msra.mxu0 0.0
    %104 = vmatprep.subr.mxu0 0.0
    %105 = vmatpush1.msra.mxu0 0.0
    %106 = vmatprep.subr.mxu0 0.0
    %107 = vmatpush1.msra.mxu0 0.0
    %108 = vmatprep.subr.mxu0 0.0
    %109 = vmatpush1.msra.mxu0 0.0
    %110 = vmatprep.subr.mxu0 0.0
    %111 = vmatpush1.msra.mxu0 0.0
    %112 = vmatprep.subr.mxu0 0.0
    %113 = vmatpush1.msra.mxu0 0.0
    %114 = vmatprep.subr.mxu0 0.0
    %115 = vmatpush1.msra.mxu0 0.0
    %116 = vmatprep.subr.mxu0 0.0
    %117 = vmatpush1.msra.mxu0 0.0
    %118 = vmatprep.subr.mxu0 0.0
    %119 = vmatpush1.msra.mxu0 0.0
    %120 = vmatprep.subr.mxu0 0.0
    %121 = vmatpush1.msra.mxu0 0.0
    %122 = vmatprep.subr.mxu0 0.0
    %123 = vmatpush1.msra.mxu0 0.0
    %124 = vmatprep.subr.mxu0 0.0
    %125 = vmatpush1.msra.mxu0 0.0
    %126 = vmatprep.subr.mxu0 0.0
    %127 = vmatpush1.msra.mxu0 0.0
    %128 = vmatprep.subr.mxu0 0.0
    %129 = vmatpush1.msra.mxu0 0.0
    %130 = vmatprep.subr.mxu0 0.0
    %131 = vmatpush1.msra.mxu0 0.0
    %132 = vmatprep.subr.mxu0 0.0
    %133 = vmatpush1.msra.mxu0 0.0
    %134 = vmatprep.subr.mxu0 0.0
    %135 = vmatpush1.msra.mxu0 0.0
    %136 = vmatprep.subr.mxu0 0.0
    %137 = vmatpush1.msra.mxu0 0.0
    %138 = vmatprep.subr.mxu0 0.0
    %139 = vmatpush1.msra.mxu0 0.0
    %140 = vmatprep.mubr.f32.mxu0 0.0
    %141 = vmatmul.mubr.f32.gmra.mrb[0].mxu0 %v74
    %v142 = vpop.f32.mrb[0].mxu0
    %v143 = vadd.f32 %v70, %v142
    %v144 = vpop.f32.mrb[0].mxu0
    %145 = vdwg.mxu0
    %v146 = vtanh.pop %v143
    %v147 = vld [vmem:[#allocation7] sm:$0xff]
    %v148 = vld [vmem:[#allocation7 + $0x8] sm:$0xff]
    %v149 = vld [vmem:[#allocation7 + $0x10] sm:$0xff]
    %v150 = vld [vmem:[#allocation7 + $0x18] sm:$0xff]
    %v151 = vld [vmem:[#allocation7 + $0x20] sm:$0xff]
    %v152 = vld [vmem:[#allocation7 + $0x28] sm:$0xff]
    %v153 = vld [vmem:[#allocation7 + $0x30] sm:$0xff]
    %v154 = vld [vmem:[#allocation7 + $0x38] sm:$0xff]
    %v155 = vld [vmem:[#allocation7 + $0x40] sm:$0xff]
    %v156 = vld [vmem:[#allocation7 + $0x48] sm:$0xff]
    %v157 = vld [vmem:[#allocation7 + $0x50] sm:$0xff]
    %v158 = vld [vmem:[#allocation7 + $0x58] sm:$0xff]
    %v159 = vld [vmem:[#allocation7 + $0x60] sm:$0xff]
    %v160 = vld [vmem:[#allocation7 + $0x68] sm:$0xff]
    %v161 = vld [vmem:[#allocation7 + $0x70] sm:$0xff]
    %v162 = vld [vmem:[#allocation7 + $0x78] sm:$0xff]
    %v163 = vld [vmem:[%s4] sm:$0x1]
    %v165 = vlaneseq
    %v166 = vshrl.u32 %v165, 7
    %v167 = vsub.s32 0, %v166
    %v168 = vrot.slane %v163, %v167
    %170 = vmatprep.subr.mxu0 0.0
    %171 = vmatpush1.msra.mxu0 %v147
    %172 = vmatprep.subr.mxu0 0.0
    %173 = vmatpush1.msra.mxu0 %v148
    %174 = vmatprep.subr.mxu0 0.0
    %175 = vmatpush1.msra.mxu0 %v149
    %176 = vmatprep.subr.mxu0 0.0
    %177 = vmatpush1.msra.mxu0 %v150
    %178 = vmatprep.subr.mxu0 0.0
    %179 = vmatpush1.msra.mxu0 %v151
    %180 = vmatprep.subr.mxu0 0.0
    %181 = vmatpush1.msra.mxu0 %v152
    %182 = vmatprep.subr.mxu0 0.0
    %183 = vmatpush1.msra.mxu0 %v153
    %184 = vmatprep.subr.mxu0 0.0
    %185 = vmatpush1.msra.mxu0 %v154
    %186 = vmatprep.subr.mxu0 0.0
    %187 = vmatpush1.msra.mxu0 %v155
    %188 = vmatprep.subr.mxu0 0.0
    %189 = vmatpush1.msra.mxu0 %v156
    %190 = vmatprep.subr.mxu0 0.0
    %191 = vmatpush1.msra.mxu0 %v157
    %192 = vmatprep.subr.mxu0 0.0
    %193 = vmatpush1.msra.mxu0 %v158
    %194 = vmatprep.subr.mxu0 0.0
    %195 = vmatpush1.msra.mxu0 %v159
    %196 = vmatprep.subr.mxu0 0.0
    %197 = vmatpush1.msra.mxu0 %v160
    %198 = vmatprep.subr.mxu0 0.0
    %199 = vmatpush1.msra.mxu0 %v161
    %200 = vmatprep.subr.mxu0 0.0
    %201 = vmatpush1.msra.mxu0 %v162
    %202 = vmatprep.subr.mxu0 0.0
    %203 = vmatpush1.msra.mxu0 0.0
    %204 = vmatprep.subr.mxu0 0.0
    %205 = vmatpush1.msra.mxu0 0.0
    %206 = vmatprep.subr.mxu0 0.0
    %207 = vmatpush1.msra.mxu0 0.0
    %208 = vmatprep.subr.mxu0 0.0
    %209 = vmatpush1.msra.mxu0 0.0
    %210 = vmatprep.subr.mxu0 0.0
    %211 = vmatpush1.msra.mxu0 0.0
    %212 = vmatprep.subr.mxu0 0.0
    %213 = vmatpush1.msra.mxu0 0.0
    %214 = vmatprep.subr.mxu0 0.0
    %215 = vmatpush1.msra.mxu0 0.0
    %216 = vmatprep.subr.mxu0 0.0
    %217 = vmatpush1.msra.mxu0 0.0
    %218 = vmatprep.subr.mxu0 0.0
    %219 = vmatpush1.msra.mxu0 0.0
    %220 = vmatprep.subr.mxu0 0.0
    %221 = vmatpush1.msra.mxu0 0.0
    %222 = vmatprep.subr.mxu0 0.0
    %223 = vmatpush1.msra.mxu0 0.0
    %224 = vmatprep.subr.mxu0 0.0
    %225 = vmatpush1.msra.mxu0 0.0
    %226 = vmatprep.subr.mxu0 0.0
    %227 = vmatpush1.msra.mxu0 0.0
    %228 = vmatprep.subr.mxu0 0.0
    %229 = vmatpush1.msra.mxu0 0.0
    %230 = vmatprep.subr.mxu0 0.0
    %231 = vmatpush1.msra.mxu0 0.0
    %232 = vmatprep.subr.mxu0 0.0
    %233 = vmatpush1.msra.mxu0 0.0
    %234 = vmatprep.mubr.f32.mxu0 0.0
    %235 = vmatmul.mubr.f32.gmra.mrb[0].mxu0 %v146
    %v236 = vpop.f32.mrb[0].mxu0
    %v237 = vadd.f32 %v168, %v236
    %v238 = vpop.f32.mrb[0].mxu0
    %239 = vdwg.mxu0
    %v240 = vtanh.pop %v237
    %241 = vst [vmem:[#allocation8] sm:$0xff] %v240
    // Predicated region
    $region34: #{mlp_forward_fused.1} parent=1 // pred_check
      _
    $region35: #{mlp_forward_fused.1} parent=1 // pred_check_branch
      %243 = sbr.rel (0) target = $region37
    $region36: #{mlp_forward_fused.1} parent=1 // pred_region
      %s245 = ssub.s32 128, 128
      %246 = vsyncadd [#allocation4], %s245
      %s248 = sshll.u32 [#allocation8], 4
      %s249 = int_to_ptr.vmem [resolvable:$true] %s248
      %251 = dma.vmem_to_hbm [thread:$0]  %s249, 128, %s5, [#allocation4]
    $region37: #{mlp_forward_fused.1} parent=1 // pred_fallthru
      _
    // Predicated region
    $region38: #{mlp_forward_fused.1} parent=1 // pred_check
      _
    $region39: #{mlp_forward_fused.1} parent=1 // pred_check_branch
      %253 = sbr.rel (0) target = $region41
    $region40: #{mlp_forward_fused.1} parent=1 // pred_region
      %254 = dma.done [#allocation4], 128
    $region41: #{mlp_forward_fused.1} parent=1 // pred_fallthru
      _
    %255 = vsyncpa [#allocation3], 1
    %256 = vsyncpa [#allocation6], 1
    %257 = vsyncpa [#allocation4], 1

</llo_original>
